<compile_context>
chip_gen: v5e
topology: v5e:2x2
jax: 0.10.0
libtpu: 0.0.40
codegen_flags: <defaults>
</compile_context>

<pallas_src>
import jax
import jax.numpy as jnp
from jax.experimental import pallas as pl
from jax.experimental.pallas import tpu as pltpu

_SCALE = 0.3
_LANES = 128
_MAX_TB = 512                      # rows per grid step: 512 * 128 * 4B = 256 KiB per block
_PALLAS_MIN_ELEMENTS = 64 * 1024   # below this, plain XLA fusion beats kernel launch overhead


def _logstd_broadcast_kernel(bias_ref, out_ref):
    # bias_ref: (1, 128) pre-tiled bias period; out_ref: (TB, 128).
    # Pure sublane broadcast -> full-lane (unmasked) stores; no zeros materialization, no add.
    out_ref[...] = jnp.broadcast_to(bias_ref[...], out_ref.shape)


def _logstd_pallas(logstd_param, B, A, dtype):
    """AddBias(zeros((B, A))) as a lane-dense Pallas broadcast kernel."""
    assert A <= _LANES and _LANES % A == 0
    reps = _LANES // A
    # Pre-tile the bias to one full 128-lane period (done once, tiny).
    bias_row = jnp.tile(logstd_param.reshape(1, A).astype(dtype), (1, reps))  # (1, 128)

    total = B * A
    rows = pl.cdiv(total, _LANES)
    tb = min(_MAX_TB, ((rows + 7) // 8) * 8)        # multiple of 8 sublanes
    rows_padded = ((rows + tb - 1) // tb) * tb
    grid = (rows_padded // tb,)

    itemsize = jnp.dtype(dtype).itemsize
    out = pl.pallas_call(
        _logstd_broadcast_kernel,
        out_shape=jax.ShapeDtypeStruct((rows_padded, _LANES), dtype),
        grid=grid,
        in_specs=[pl.BlockSpec((1, _LANES), lambda i: (0, 0))],
        out_specs=pl.BlockSpec((tb, _LANES), lambda i: (i, 0)),
        compiler_params=pltpu.CompilerParams(
            dimension_semantics=("parallel",),      # lets v7x shard rows across its 2 TCs
        ),
        cost_estimate=pl.CostEstimate(
            flops=0,
            transcendentals=0,
            bytes_accessed=_LANES * itemsize + rows_padded * _LANES * itemsize,
        ),
    )(bias_row)

    return out.reshape(-1)[:total].reshape(B, A)


def diag_gaussian_adaptive(action_mean, logstd_param, *, use_pallas=None):
    """Forward of DiagGaussian_adaptive.

    Returns (loc, scale, action_logstd):
      loc           = action_mean                        (Normal's mean, pass-through)
      scale         = 0.3 everywhere                     (Normal's scale)
      action_logstd = zeros + logstd bias (broadcast)    (the AddBias output the module computes)
    """
    B, A = action_mean.shape
    dtype = action_mean.dtype

    lane_friendly = (A <= _LANES) and (_LANES % A == 0)
    if use_pallas is None:
        use_pallas = lane_friendly and (B * A >= _PALLAS_MIN_ELEMENTS)

    loc = action_mean                              # no copy through the kernel
    scale = jnp.full_like(action_mean, _SCALE)     # constant fill, fused by XLA

    if use_pallas and lane_friendly:
        action_logstd = _logstd_pallas(logstd_param, B, A, dtype)
    else:
        # Tiny or lane-unfriendly shapes: plain XLA broadcast (fuses into neighbors for free).
        action_logstd = jnp.zeros((B, A), dtype) + logstd_param.reshape(1, -1).astype(dtype)

    return loc, scale, action_logstd


if __name__ == "__main__":
    key = jax.random.PRNGKey(0)

    def run_and_check(batch, num_outputs):
        k1, k2 = jax.random.split(jax.random.fold_in(key, batch))
        action_mean = jax.random.normal(k1, (batch, num_outputs), dtype=jnp.float32)
        # AddBias parameter (zeros-initialized in the module; use nonzero values so the
        # broadcast path is actually exercised).
        logstd_param = jax.random.normal(k2, (num_outputs,), dtype=jnp.float32)

        # Force the Pallas path so the kernel runs even at tiny sizes.
        loc, scale, action_logstd = diag_gaussian_adaptive(
            action_mean, logstd_param, use_pallas=True)
        jax.block_until_ready((loc, scale, action_logstd))

        # Pure-JAX reference of the PyTorch forward.
        ref_logstd = jnp.zeros_like(action_mean) + logstd_param[None, :]
        assert jnp.array_equal(loc, action_mean), "loc mismatch"
        assert jnp.allclose(scale, 0.3 * jnp.ones_like(action_mean)), "scale mismatch"
        assert jnp.allclose(action_logstd, ref_logstd), "logstd mismatch"

    run_and_check(batch=8, num_outputs=4)     # module-sized tiny case
    run_and_check(batch=512, num_outputs=4)   # multi-row lane-dense slab

    print("KERNEL_OK")
</pallas_src>

<mosaic_0001>
module attributes {stable_mosaic.version = 11 : i64} {
  func.func @_logstd_broadcast_kernel(%arg0: i32, %arg1: memref<1x128xf32, #tpu.memory_space<vmem>>, %arg2: memref<8x128xf32, #tpu.memory_space<vmem>>) attributes {dimension_semantics = [#tpu.dimension_semantics<parallel>], iteration_bounds = array<i64: 1>, scalar_prefetch = 0 : i64, scratch_operands = 0 : i64, tpu.core_type = #tpu.core_type<tc>, window_params = [{pipeline_mode = #tpu.pipeline_mode<synchronous>, transform_indices = @transform_0, window_bounds = array<i64: 1, 128>}, {transform_indices = @transform_1, window_bounds = array<i64: 8, 128>}]} {
    %c0 = arith.constant 0 : index
    %c0_0 = arith.constant 0 : index
    %0 = vector.load %arg1[%c0, %c0_0] : memref<1x128xf32, #tpu.memory_space<vmem>>, vector<1x128xf32>
    %1 = vector.shape_cast %0 : vector<1x128xf32> to vector<1x128xf32>
    %2 = vector.broadcast %1 : vector<1x128xf32> to vector<8x128xf32>
    %c0_1 = arith.constant 0 : index
    %c0_2 = arith.constant 0 : index
    %3 = vector.load %arg2[%c0_1, %c0_2] : memref<8x128xf32, #tpu.memory_space<vmem>>, vector<8x128xf32>
    tpu.vector_store %arg2[%c0_1, %c0_2], %2 {strides = array<i32>} : memref<8x128xf32, #tpu.memory_space<vmem>>, vector<8x128xf32>,
    return
  }
  func.func @transform_0(%arg0: i32) -> (i32, i32) {
    %c0_i32 = arith.constant 0 : i32
    %c0_i32_0 = arith.constant 0 : i32
    %c0_i32_1 = arith.constant 0 : i32
    return %c0_i32, %c0_i32_0 : i32, i32
  }
  func.func @transform_1(%arg0: i32) -> (i32, i32) {
    %c0_i32 = arith.constant 0 : i32
    %c0_i32_0 = arith.constant 0 : i32
    return %arg0, %c0_i32 : i32, i32
  }
}

</mosaic_0001>

<llo_original>
// kernel: tpu_custom_call.1
$region0: #{tpu_custom_call.1}
  #allocation0 [shape = 'u32[]', space=smem, size = 0x4, offset = 0x4, fixed_abs, tag = 'smem constant byte address 0x4 - core index']
  #allocation1 [shape = 'u32[72,128]{1,0:T(1,128)}', space=vmem, size = 0x9000, scoped, tag = 'internal scratch']
  %s0 = inlined_call_operand.hbm [shape: f32[1,128], index: 0, kind: input, shape index: {}]
  %s1 = inlined_call_operand.hbm [shape: f32[8,128], index: 1, kind: output, shape index: {}]
  %s2 = sld [smem:[#allocation0]]
  $region18: #{tpu_custom_call.1} parent=0
    _
  %s4 = ssub.s32 1, %s2
  %s5 = scalar_select 0, %s4, %s2
  $region1: #{tpu_custom_call.1} parent=0
    #allocation2 [shape = 'u8[512]{0}', space=vmem, size = 0x400, scoped, tag = 'input window, operand 0, single buffered']
    #allocation3 [shape = 's32[1]{0}', space=sflag, size = 0x4, scoped, tag = 'scoped memory for tpu_custom_call.1']
    #allocation4 [shape = 's32[1]{0}', space=sflag, size = 0x4, scoped, tag = 'scoped memory for tpu_custom_call.1']
    #allocation5 [shape = 'u8[4096]{0}', space=vmem, size = 0x1000, scoped, tag = 'output window, operand 0, single buffered']
    %6 = vsyncpa [#allocation3], 0
    %7 = vsyncpa [#allocation4], 0
    // Predicated region
    $region2: #{tpu_custom_call.1} parent=1 // pred_check
      _
    $region3: #{tpu_custom_call.1} parent=1 // pred_check_branch
      %9 = sbr.rel (0) target = $region5
    $region4: #{tpu_custom_call.1} parent=1 // pred_region
      %11 = vsyncadd [#allocation3], 0
      %s13 = sshll.u32 %s0, 4
      %s14 = int_to_ptr.hbm [resolvable:$true] %s13
      %s15 = sshll.u32 [#allocation2], 4
      %s16 = int_to_ptr.vmem [resolvable:$true] %s15
      %18 = dma.hbm_to_vmem [thread:$0]  %s14, 16, %s16, [#allocation3]
    $region5: #{tpu_custom_call.1} parent=1 // pred_fallthru
      _
    // Predicated region
    $region6: #{tpu_custom_call.1} parent=1 // pred_check
      _
    $region7: #{tpu_custom_call.1} parent=1 // pred_check_branch
      %20 = sbr.rel (0) target = $region9
    $region8: #{tpu_custom_call.1} parent=1 // pred_region
      %22 = dma.done [#allocation3], 16
    $region9: #{tpu_custom_call.1} parent=1 // pred_fallthru
      _
    %v23 = vld [vmem:[#allocation2] sm:$0x1]
    %v25 = vperm.slane %v23, 0
    %27 = vst [vmem:[#allocation5] sm:$0xff] %v25
    // Predicated region
    $region10: #{tpu_custom_call.1} parent=1 // pred_check
      _
    $region11: #{tpu_custom_call.1} parent=1 // pred_check_branch
      %29 = sbr.rel (0) target = $region13
    $region12: #{tpu_custom_call.1} parent=1 // pred_region
      %31 = vsyncadd [#allocation4], 0
      %s33 = sshll.u32 [#allocation5], 4
      %s34 = int_to_ptr.vmem [resolvable:$true] %s33
      %s35 = sshll.u32 %s1, 4
      %s36 = int_to_ptr.hbm [resolvable:$true] %s35
      %38 = dma.vmem_to_hbm [thread:$0]  %s34, 128, %s36, [#allocation4]
    $region13: #{tpu_custom_call.1} parent=1 // pred_fallthru
      _
    // Predicated region
    $region14: #{tpu_custom_call.1} parent=1 // pred_check
      _
    $region15: #{tpu_custom_call.1} parent=1 // pred_check_branch
      %40 = sbr.rel (0) target = $region17
    $region16: #{tpu_custom_call.1} parent=1 // pred_region
      %42 = dma.done [#allocation4], 128
    $region17: #{tpu_custom_call.1} parent=1 // pred_fallthru
      _
    %43 = vsyncpa [#allocation3], 1
    %44 = vsyncpa [#allocation4], 1

</llo_original>
